<compile_context>
chip_gen: v5e
topology: v5e:2x2
jax: 0.10.0
libtpu: 0.0.40
codegen_flags: <defaults>
</compile_context>

<pallas_src>
import functools

import jax
import jax.numpy as jnp
from jax.experimental import pallas as pl
from jax.experimental.pallas import tpu as pltpu


# ----------------------------------------------------------------------------
# Small helpers
# ----------------------------------------------------------------------------
def _leaky_relu(x, slope=0.2):
    return jnp.where(x > 0, x, slope * x)


def _round_up(n, m):
    return ((n + m - 1) // m) * m


@functools.lru_cache(maxsize=None)
def _vmem_capacity_bytes():
    """Per-core VMEM capacity; conservative 64 MiB (v7x) if the query fails."""
    try:
        return int(pltpu.get_tpu_info().vmem_capacity_bytes)
    except Exception:  # narrow capability check only, cached once
        return 64 * 1024 * 1024


@functools.lru_cache(maxsize=None)
def _buffered_weight_specs_supported():
    """One-time cached probe: can BlockSpec take pipeline_mode=pl.Buffered(1)?"""
    if not hasattr(pl, "Buffered"):
        return False

    def _probe_kernel(x_ref, o_ref):
        o_ref[...] = x_ref[...] + 1.0

    try:
        f = pl.pallas_call(
            _probe_kernel,
            out_shape=jax.ShapeDtypeStruct((16, 128), jnp.float32),
            grid=(2,),
            in_specs=[pl.BlockSpec((8, 128), lambda i: (0, 0),
                                   pipeline_mode=pl.Buffered(1))],
            out_specs=pl.BlockSpec((8, 128), lambda i: (i, 0)),
        )
        jax.block_until_ready(f(jnp.zeros((8, 128), jnp.float32)))
        return True
    except Exception:  # probe only; real kernel errors are NOT swallowed
        return False


def _vmem_needed_bytes(tb, Lp, Hp, Op, a_isz, single_buffer):
    """Estimated resident VMEM for one grid step (weights + tiles + live h)."""
    wmul = 1 if single_buffer else 2
    wmax = max(Hp, Op)
    weights = wmul * (a_isz * (Lp * Hp + 3 * Hp * Hp + Hp * Op) + 4 * 8 * wmax)
    io_tiles = 2 * tb * (Lp * a_isz + Op * 4)            # double-buffered in/out
    live_act = 2 * tb * Hp * a_isz + 2 * tb * wmax * 4   # inter-layer h + f32 acc
    return weights + io_tiles + live_act


def _select_batch_tiling(B, Lp, Hp, Op, a_isz, single_buffer, budget):
    """Largest batch tile that fits VMEM; grid=(1,) unless padded batch > 512."""
    cands = []
    t = min(_round_up(B, 8), 512)
    while True:
        if t not in cands:
            cands.append(t)
        if t <= 8:
            break
        t = max(8, _round_up(t // 2, 8))
    for tb in cands:
        if _vmem_needed_bytes(tb, Lp, Hp, Op, a_isz, single_buffer) <= budget:
            return _round_up(B, tb), tb
    raise ValueError(
        "Decoder parameters do not fit in VMEM even with the smallest batch "
        "tile; reduce hidden_dim or use a narrower compute dtype.")


# ----------------------------------------------------------------------------
# Parameter preparation (one-time: pad to lane-dense 128 multiples, cast, stack)
# ----------------------------------------------------------------------------
def prepare_decoder_params(params, compute_dtype=jnp.bfloat16):
    """Pad (zero-fill) all feature axes to multiples of 128 and cast weights.

    Zero padding is numerically exact for Linear + LeakyReLU chains (padded
    lanes stay exactly zero). Biases are stacked into one (8, Wmax) f32 block.
    """
    latent_dim = params["w1"].shape[0]
    hidden_dim = params["w1"].shape[1]
    output_dim = params["wo"].shape[1]

    Lp = _round_up(latent_dim, 128)
    Hp = _round_up(hidden_dim, 128)
    Op = _round_up(output_dim, 128)
    Wmax = max(Hp, Op)

    def pad_cast(w, rows, cols):
        return jnp.pad(w, ((0, rows - w.shape[0]),
                           (0, cols - w.shape[1]))).astype(compute_dtype)

    bias = jnp.zeros((8, Wmax), jnp.float32)
    bias = bias.at[0, :hidden_dim].set(params["b1"].reshape(-1))
    bias = bias.at[1, :hidden_dim].set(params["b2"].reshape(-1))
    bias = bias.at[2, :hidden_dim].set(params["b3"].reshape(-1))
    bias = bias.at[3, :hidden_dim].set(params["b4"].reshape(-1))
    bias = bias.at[4, :output_dim].set(params["bo"].reshape(-1))

    return {
        "w1": pad_cast(params["w1"], Lp, Hp),
        "w2": pad_cast(params["w2"], Hp, Hp),
        "w3": pad_cast(params["w3"], Hp, Hp),
        "w4": pad_cast(params["w4"], Hp, Hp),
        "wo": pad_cast(params["wo"], Hp, Op),
        "bias": bias,
        "meta": (latent_dim, hidden_dim, output_dim, Lp, Hp, Op),
    }


# ----------------------------------------------------------------------------
# Kernel + jitted forward
# ----------------------------------------------------------------------------
@functools.partial(jax.jit, static_argnames=("meta", "tb", "single_buffer"))
def _decoder_forward_impl(x, w1, w2, w3, w4, wo, bias, *, meta, tb, single_buffer):
    latent_dim, hidden_dim, output_dim, Lp, Hp, Op = meta
    del hidden_dim
    B = x.shape[0]
    Bp = _round_up(B, tb)
    compute_dtype = w1.dtype
    Wmax = bias.shape[1]

    xp = jnp.pad(x, ((0, Bp - B), (0, Lp - latent_dim))).astype(compute_dtype)

    def kernel(x_ref, w1_ref, w2_ref, w3_ref, w4_ref, wo_ref, b_ref, o_ref):
        # Fused 5-layer MLP on one batch tile: MXU matmuls with f32
        # accumulation, VPU LeakyReLU, biases added in f32.
        b = b_ref[...]
        b1 = b[0:1, :Hp]
        b2 = b[1:2, :Hp]
        b3 = b[2:3, :Hp]
        b4 = b[3:4, :Hp]
        bo = b[4:5, :Op]

        h = jnp.dot(x_ref[...], w1_ref[...],
                    preferred_element_type=jnp.float32) + b1
        h = _leaky_relu(h).astype(compute_dtype)
        h = jnp.dot(h, w2_ref[...], preferred_element_type=jnp.float32) + b2
        h = _leaky_relu(h).astype(compute_dtype)
        h = jnp.dot(h, w3_ref[...], preferred_element_type=jnp.float32) + b3
        h = _leaky_relu(h).astype(compute_dtype)
        h = jnp.dot(h, w4_ref[...], preferred_element_type=jnp.float32) + b4
        h = _leaky_relu(h).astype(compute_dtype)
        y = jnp.dot(h, wo_ref[...], preferred_element_type=jnp.float32) + bo
        o_ref[...] = y.astype(o_ref.dtype)

    # Weights/biases never change across grid steps: single-buffer them when
    # this build supports pipeline_mode (capability probed & cached once).
    def const_spec(shape):
        if single_buffer:
            return pl.BlockSpec(shape, lambda i: (0, 0),
                                pipeline_mode=pl.Buffered(1))
        return pl.BlockSpec(shape, lambda i: (0, 0))

    in_specs = [
        pl.BlockSpec((tb, Lp), lambda i: (i, 0)),
        const_spec((Lp, Hp)),
        const_spec((Hp, Hp)),
        const_spec((Hp, Hp)),
        const_spec((Hp, Hp)),
        const_spec((Hp, Op)),
        const_spec((8, Wmax)),
    ]
    out_spec = pl.BlockSpec((tb, Op), lambda i: (i, 0))

    a_isz = jnp.dtype(compute_dtype).itemsize
    budget = int(0.9 * _vmem_capacity_bytes())
    needed = _vmem_needed_bytes(tb, Lp, Hp, Op, a_isz, single_buffer)
    vmem_limit = min(max(int(needed * 1.25), 4 << 20), budget)

    flops = 2 * Bp * (Lp * Hp + 3 * Hp * Hp + Hp * Op) + 4 * Bp * Hp
    bytes_accessed = (a_isz * (Bp * Lp + Lp * Hp + 3 * Hp * Hp + Hp * Op)
                      + 4 * (Bp * Op + 8 * Wmax))
    cost = pl.CostEstimate(flops=flops, transcendentals=0,
                           bytes_accessed=bytes_accessed)

    out = pl.pallas_call(
        kernel,
        out_shape=jax.ShapeDtypeStruct((Bp, Op), jnp.float32),
        grid_spec=pltpu.PrefetchScalarGridSpec(
            num_scalar_prefetch=0,
            grid=(Bp // tb,),
            in_specs=in_specs,
            out_specs=out_spec,
        ),
        compiler_params=pltpu.CompilerParams(
            dimension_semantics=("parallel",),
            vmem_limit_bytes=vmem_limit,
        ),
        cost_estimate=cost,
    )(xp, w1, w2, w3, w4, wo, bias)

    return out[:B, :output_dim]


def decoder_forward(x, prepared):
    """x: [B, latent_dim] float32. `prepared`: output of prepare_decoder_params."""
    latent_dim, hidden_dim, output_dim, Lp, Hp, Op = prepared["meta"]
    del latent_dim, hidden_dim, output_dim
    single_buffer = _buffered_weight_specs_supported()
    a_isz = jnp.dtype(prepared["w1"].dtype).itemsize
    budget = int(0.9 * _vmem_capacity_bytes())
    _, tb = _select_batch_tiling(x.shape[0], Lp, Hp, Op, a_isz,
                                 single_buffer, budget)
    return _decoder_forward_impl(
        x, prepared["w1"], prepared["w2"], prepared["w3"], prepared["w4"],
        prepared["wo"], prepared["bias"],
        meta=prepared["meta"], tb=tb, single_buffer=single_buffer)


# ----------------------------------------------------------------------------
# Init + reference
# ----------------------------------------------------------------------------
def init_decoder_params(key, latent_dim, hidden_dim, output_dim):
    """Xavier-normal init mirroring Decoder.init_weights().

    PyTorch stores Linear.weight as (out, in); we store the transpose (in, out)
    so the kernel does x @ W directly (Xavier-normal std is symmetric in fans).
    Biases use PyTorch's default Linear init U(-1/sqrt(fan_in), 1/sqrt(fan_in)).
    """
    gain_lrelu = (2.0 / (1.0 + 0.01 ** 2)) ** 0.5  # calculate_gain('leaky_relu')

    def xavier_normal(k, fan_in, fan_out, gain):
        std = gain * (2.0 / (fan_in + fan_out)) ** 0.5
        return std * jax.random.normal(k, (fan_in, fan_out), dtype=jnp.float32)

    def bias(k, fan_in, fan_out):
        bound = 1.0 / (fan_in ** 0.5)
        return jax.random.uniform(
            k, (1, fan_out), minval=-bound, maxval=bound, dtype=jnp.float32)

    keys = jax.random.split(key, 10)
    return {
        "w1": xavier_normal(keys[0], latent_dim, hidden_dim, gain_lrelu),
        "w2": xavier_normal(keys[1], hidden_dim, hidden_dim, gain_lrelu),
        "w3": xavier_normal(keys[2], hidden_dim, hidden_dim, gain_lrelu),
        "w4": xavier_normal(keys[3], hidden_dim, hidden_dim, gain_lrelu),
        "wo": xavier_normal(keys[4], hidden_dim, output_dim, 1.0),
        "b1": bias(keys[5], latent_dim, hidden_dim),
        "b2": bias(keys[6], hidden_dim, hidden_dim),
        "b3": bias(keys[7], hidden_dim, hidden_dim),
        "b4": bias(keys[8], hidden_dim, hidden_dim),
        "bo": bias(keys[9], hidden_dim, output_dim),
    }


def decoder_reference(x, params, compute_dtype=jnp.float32):
    """Pure-JAX reference; mirrors the kernel's operand rounding when
    compute_dtype is bf16 (accumulation stays f32)."""
    def cast(a):
        return a.astype(compute_dtype).astype(jnp.float32)

    def mm(a, b):
        return jnp.dot(a, b, precision=jax.lax.Precision.HIGHEST)

    h = mm(cast(x), cast(params["w1"])) + params["b1"]
    h = jnp.where(h > 0, h, 0.2 * h)
    h = mm(cast(h), cast(params["w2"])) + params["b2"]
    h = jnp.where(h > 0, h, 0.2 * h)
    h = mm(cast(h), cast(params["w3"])) + params["b3"]
    h = jnp.where(h > 0, h, 0.2 * h)
    h = mm(cast(h), cast(params["w4"])) + params["b4"]
    h = jnp.where(h > 0, h, 0.2 * h)
    return mm(cast(h), cast(params["wo"])) + params["bo"]


if __name__ == "__main__":
    latent_dim, hidden_dim, output_dim = 16, 32, 64
    batch = 16

    key = jax.random.PRNGKey(0)
    k_params, k_x = jax.random.split(key)

    params = init_decoder_params(k_params, latent_dim, hidden_dim, output_dim)
    x = jax.random.normal(k_x, (batch, latent_dim), dtype=jnp.float32)

    prepared = prepare_decoder_params(params, compute_dtype=jnp.bfloat16)
    out = jax.block_until_ready(decoder_forward(x, prepared))

    ref = decoder_reference(x, params, compute_dtype=jnp.bfloat16)
    assert out.shape == (batch, output_dim), out.shape
    max_err = float(jnp.max(jnp.abs(out - ref)))
    assert jnp.allclose(out, ref, atol=1e-3, rtol=1e-3), f"mismatch: {max_err}"

    print("KERNEL_OK")
</pallas_src>

<mosaic_0001>
module attributes {stable_mosaic.version = 11 : i64} {
  func.func @_probe_kernel(%arg0: i32, %arg1: memref<8x128xf32, #tpu.memory_space<vmem>>, %arg2: memref<8x128xf32, #tpu.memory_space<vmem>>) attributes {dimension_semantics = [#tpu.dimension_semantics<arbitrary>], iteration_bounds = array<i64: 2>, scalar_prefetch = 0 : i64, scratch_operands = 0 : i64, tpu.core_type = #tpu.core_type<tc>, window_params = [{pipeline_mode = #tpu.pipeline_mode<synchronous>, transform_indices = @transform_0, window_bounds = array<i64: 8, 128>}, {transform_indices = @transform_1, window_bounds = array<i64: 8, 128>}]} {
    %c0 = arith.constant 0 : index
    %c0_0 = arith.constant 0 : index
    %0 = vector.load %arg1[%c0, %c0_0] : memref<8x128xf32, #tpu.memory_space<vmem>>, vector<8x128xf32>
    %cst = arith.constant 1.000000e+00 : f32
    %1 = vector.broadcast %cst : f32 to vector<8x128xf32>
    %2 = arith.addf %0, %1 : vector<8x128xf32>
    %c0_1 = arith.constant 0 : index
    %c0_2 = arith.constant 0 : index
    %3 = vector.load %arg2[%c0_1, %c0_2] : memref<8x128xf32, #tpu.memory_space<vmem>>, vector<8x128xf32>
    tpu.vector_store %arg2[%c0_1, %c0_2], %2 {strides = array<i32>} : memref<8x128xf32, #tpu.memory_space<vmem>>, vector<8x128xf32>,
    return
  }
  func.func @transform_0(%arg0: i32) -> (i32, i32) {
    %c0_i32 = arith.constant 0 : i32
    %c0_i32_0 = arith.constant 0 : i32
    %c0_i32_1 = arith.constant 0 : i32
    return %c0_i32, %c0_i32_0 : i32, i32
  }
  func.func @transform_1(%arg0: i32) -> (i32, i32) {
    %c0_i32 = arith.constant 0 : i32
    %c0_i32_0 = arith.constant 0 : i32
    return %arg0, %c0_i32 : i32, i32
  }
}

module attributes {stable_mosaic.version = 11 : i64} {
  func.func @kernel(%arg0: i32, %arg1: memref<16x128xbf16, #tpu.memory_space<vmem>>, %arg2: memref<128x128xbf16, #tpu.memory_space<vmem>>, %arg3: memref<128x128xbf16, #tpu.memory_space<vmem>>, %arg4: memref<128x128xbf16, #tpu.memory_space<vmem>>, %arg5: memref<128x128xbf16, #tpu.memory_space<vmem>>, %arg6: memref<128x128xbf16, #tpu.memory_space<vmem>>, %arg7: memref<8x128xf32, #tpu.memory_space<vmem>>, %arg8: memref<16x128xf32, #tpu.memory_space<vmem>>) attributes {dimension_semantics = [#tpu.dimension_semantics<parallel>], iteration_bounds = array<i64: 1>, scalar_prefetch = 0 : i64, scratch_operands = 0 : i64, tpu.core_type = #tpu.core_type<tc>, window_params = [{transform_indices = @transform_0, window_bounds = array<i64: 16, 128>}, {pipeline_mode = #tpu.pipeline_mode<synchronous>, transform_indices = @transform_1, window_bounds = array<i64: 128, 128>}, {pipeline_mode = #tpu.pipeline_mode<synchronous>, transform_indices = @transform_2, window_bounds = array<i64: 128, 128>}, {pipeline_mode = #tpu.pipeline_mode<synchronous>, transform_indices = @transform_3, window_bounds = array<i64: 128, 128>}, {pipeline_mode = #tpu.pipeline_mode<synchronous>, transform_indices = @transform_4, window_bounds = array<i64: 128, 128>}, {pipeline_mode = #tpu.pipeline_mode<synchronous>, transform_indices = @transform_5, window_bounds = array<i64: 128, 128>}, {pipeline_mode = #tpu.pipeline_mode<synchronous>, transform_indices = @transform_6, window_bounds = array<i64: 8, 128>}, {transform_indices = @transform_7, window_bounds = array<i64: 16, 128>}]} {
    %c0 = arith.constant 0 : index
    %c0_0 = arith.constant 0 : index
    %0 = vector.load %arg7[%c0, %c0_0] : memref<8x128xf32, #tpu.memory_space<vmem>>, vector<8x128xf32>
    %1 = vector.extract_strided_slice %0 {offsets = [0, 0], sizes = [1, 128], strides = [1, 1]} : vector<8x128xf32> to vector<1x128xf32>
    %2 = vector.extract_strided_slice %0 {offsets = [1, 0], sizes = [1, 128], strides = [1, 1]} : vector<8x128xf32> to vector<1x128xf32>
    %3 = vector.extract_strided_slice %0 {offsets = [2, 0], sizes = [1, 128], strides = [1, 1]} : vector<8x128xf32> to vector<1x128xf32>
    %4 = vector.extract_strided_slice %0 {offsets = [3, 0], sizes = [1, 128], strides = [1, 1]} : vector<8x128xf32> to vector<1x128xf32>
    %5 = vector.extract_strided_slice %0 {offsets = [4, 0], sizes = [1, 128], strides = [1, 1]} : vector<8x128xf32> to vector<1x128xf32>
    %c0_1 = arith.constant 0 : index
    %c0_2 = arith.constant 0 : index
    %6 = vector.load %arg1[%c0_1, %c0_2] : memref<16x128xbf16, #tpu.memory_space<vmem>>, vector<16x128xbf16>
    %c0_3 = arith.constant 0 : index
    %c0_4 = arith.constant 0 : index
    %7 = vector.load %arg2[%c0_3, %c0_4] : memref<128x128xbf16, #tpu.memory_space<vmem>>, vector<128x128xbf16>
    %cst = arith.constant dense<0.000000e+00> : vector<16x128xf32>
    %8 = tpu.matmul %6, %7, %cst {dimension_numbers = #tpu.dot_dimension_numbers<[1], [0], [0], [1], [0, 0, 1, 1], [], []>} : vector<16x128xbf16>, vector<128x128xbf16>, vector<16x128xf32> -> vector<16x128xf32>
    %9 = vector.broadcast %1 : vector<1x128xf32> to vector<16x128xf32>
    %10 = arith.addf %8, %9 : vector<16x128xf32>
    %cst_5 = arith.constant 0.000000e+00 : f32
    %11 = vector.broadcast %cst_5 : f32 to vector<16x128xf32>
    %12 = arith.cmpf ogt, %10, %11 : vector<16x128xf32>
    %cst_6 = arith.constant 2.000000e-01 : f32
    %13 = vector.broadcast %cst_6 : f32 to vector<16x128xf32>
    %14 = arith.mulf %13, %10 : vector<16x128xf32>
    %15 = arith.select %12, %10, %14 : vector<16x128xi1>, vector<16x128xf32>
    %16 = arith.truncf %15 : vector<16x128xf32> to vector<16x128xbf16>
    %c0_7 = arith.constant 0 : index
    %c0_8 = arith.constant 0 : index
    %17 = vector.load %arg3[%c0_7, %c0_8] : memref<128x128xbf16, #tpu.memory_space<vmem>>, vector<128x128xbf16>
    %cst_9 = arith.constant dense<0.000000e+00> : vector<16x128xf32>
    %18 = tpu.matmul %16, %17, %cst_9 {dimension_numbers = #tpu.dot_dimension_numbers<[1], [0], [0], [1], [0, 0, 1, 1], [], []>} : vector<16x128xbf16>, vector<128x128xbf16>, vector<16x128xf32> -> vector<16x128xf32>
    %19 = vector.broadcast %2 : vector<1x128xf32> to vector<16x128xf32>
    %20 = arith.addf %18, %19 : vector<16x128xf32>
    %cst_10 = arith.constant 0.000000e+00 : f32
    %21 = vector.broadcast %cst_10 : f32 to vector<16x128xf32>
    %22 = arith.cmpf ogt, %20, %21 : vector<16x128xf32>
    %cst_11 = arith.constant 2.000000e-01 : f32
    %23 = vector.broadcast %cst_11 : f32 to vector<16x128xf32>
    %24 = arith.mulf %23, %20 : vector<16x128xf32>
    %25 = arith.select %22, %20, %24 : vector<16x128xi1>, vector<16x128xf32>
    %26 = arith.truncf %25 : vector<16x128xf32> to vector<16x128xbf16>
    %c0_12 = arith.constant 0 : index
    %c0_13 = arith.constant 0 : index
    %27 = vector.load %arg4[%c0_12, %c0_13] : memref<128x128xbf16, #tpu.memory_space<vmem>>, vector<128x128xbf16>
    %cst_14 = arith.constant dense<0.000000e+00> : vector<16x128xf32>
    %28 = tpu.matmul %26, %27, %cst_14 {dimension_numbers = #tpu.dot_dimension_numbers<[1], [0], [0], [1], [0, 0, 1, 1], [], []>} : vector<16x128xbf16>, vector<128x128xbf16>, vector<16x128xf32> -> vector<16x128xf32>
    %29 = vector.broadcast %3 : vector<1x128xf32> to vector<16x128xf32>
    %30 = arith.addf %28, %29 : vector<16x128xf32>
    %cst_15 = arith.constant 0.000000e+00 : f32
    %31 = vector.broadcast %cst_15 : f32 to vector<16x128xf32>
    %32 = arith.cmpf ogt, %30, %31 : vector<16x128xf32>
    %cst_16 = arith.constant 2.000000e-01 : f32
    %33 = vector.broadcast %cst_16 : f32 to vector<16x128xf32>
    %34 = arith.mulf %33, %30 : vector<16x128xf32>
    %35 = arith.select %32, %30, %34 : vector<16x128xi1>, vector<16x128xf32>
    %36 = arith.truncf %35 : vector<16x128xf32> to vector<16x128xbf16>
    %c0_17 = arith.constant 0 : index
    %c0_18 = arith.constant 0 : index
    %37 = vector.load %arg5[%c0_17, %c0_18] : memref<128x128xbf16, #tpu.memory_space<vmem>>, vector<128x128xbf16>
    %cst_19 = arith.constant dense<0.000000e+00> : vector<16x128xf32>
    %38 = tpu.matmul %36, %37, %cst_19 {dimension_numbers = #tpu.dot_dimension_numbers<[1], [0], [0], [1], [0, 0, 1, 1], [], []>} : vector<16x128xbf16>, vector<128x128xbf16>, vector<16x128xf32> -> vector<16x128xf32>
    %39 = vector.broadcast %4 : vector<1x128xf32> to vector<16x128xf32>
    %40 = arith.addf %38, %39 : vector<16x128xf32>
    %cst_20 = arith.constant 0.000000e+00 : f32
    %41 = vector.broadcast %cst_20 : f32 to vector<16x128xf32>
    %42 = arith.cmpf ogt, %40, %41 : vector<16x128xf32>
    %cst_21 = arith.constant 2.000000e-01 : f32
    %43 = vector.broadcast %cst_21 : f32 to vector<16x128xf32>
    %44 = arith.mulf %43, %40 : vector<16x128xf32>
    %45 = arith.select %42, %40, %44 : vector<16x128xi1>, vector<16x128xf32>
    %46 = arith.truncf %45 : vector<16x128xf32> to vector<16x128xbf16>
    %c0_22 = arith.constant 0 : index
    %c0_23 = arith.constant 0 : index
    %47 = vector.load %arg6[%c0_22, %c0_23] : memref<128x128xbf16, #tpu.memory_space<vmem>>, vector<128x128xbf16>
    %cst_24 = arith.constant dense<0.000000e+00> : vector<16x128xf32>
    %48 = tpu.matmul %46, %47, %cst_24 {dimension_numbers = #tpu.dot_dimension_numbers<[1], [0], [0], [1], [0, 0, 1, 1], [], []>} : vector<16x128xbf16>, vector<128x128xbf16>, vector<16x128xf32> -> vector<16x128xf32>
    %49 = vector.broadcast %5 : vector<1x128xf32> to vector<16x128xf32>
    %50 = arith.addf %48, %49 : vector<16x128xf32>
    %c0_25 = arith.constant 0 : index
    %c0_26 = arith.constant 0 : index
    %51 = vector.load %arg8[%c0_25, %c0_26] : memref<16x128xf32, #tpu.memory_space<vmem>>, vector<16x128xf32>
    tpu.vector_store %arg8[%c0_25, %c0_26], %50 {strides = array<i32>} : memref<16x128xf32, #tpu.memory_space<vmem>>, vector<16x128xf32>,
    return
  }
  func.func @transform_0(%arg0: i32) -> (i32, i32) {
    %c0_i32 = arith.constant 0 : i32
    %c0_i32_0 = arith.constant 0 : i32
    return %arg0, %c0_i32 : i32, i32
  }
  func.func @transform_1(%arg0: i32) -> (i32, i32) {
    %c0_i32 = arith.constant 0 : i32
    %c0_i32_0 = arith.constant 0 : i32
    %c0_i32_1 = arith.constant 0 : i32
    return %c0_i32, %c0_i32_0 : i32, i32
  }
  func.func @transform_2(%arg0: i32) -> (i32, i32) {
    %c0_i32 = arith.constant 0 : i32
    %c0_i32_0 = arith.constant 0 : i32
    %c0_i32_1 = arith.constant 0 : i32
    return %c0_i32, %c0_i32_0 : i32, i32
  }
  func.func @transform_3(%arg0: i32) -> (i32, i32) {
    %c0_i32 = arith.constant 0 : i32
    %c0_i32_0 = arith.constant 0 : i32
    %c0_i32_1 = arith.constant 0 : i32
    return %c0_i32, %c0_i32_0 : i32, i32
  }
  func.func @transform_4(%arg0: i32) -> (i32, i32) {
    %c0_i32 = arith.constant 0 : i32
    %c0_i32_0 = arith.constant 0 : i32
    %c0_i32_1 = arith.constant 0 : i32
    return %c0_i32, %c0_i32_0 : i32, i32
  }
  func.func @transform_5(%arg0: i32) -> (i32, i32) {
    %c0_i32 = arith.constant 0 : i32
    %c0_i32_0 = arith.constant 0 : i32
    %c0_i32_1 = arith.constant 0 : i32
    return %c0_i32, %c0_i32_0 : i32, i32
  }
  func.func @transform_6(%arg0: i32) -> (i32, i32) {
    %c0_i32 = arith.constant 0 : i32
    %c0_i32_0 = arith.constant 0 : i32
    %c0_i32_1 = arith.constant 0 : i32
    return %c0_i32, %c0_i32_0 : i32, i32
  }
  func.func @transform_7(%arg0: i32) -> (i32, i32) {
    %c0_i32 = arith.constant 0 : i32
    %c0_i32_0 = arith.constant 0 : i32
    return %arg0, %c0_i32 : i32, i32
  }
}

</mosaic_0001>

<llo_original>
// kernel: tpu_custom_call.1
$region0: #{tpu_custom_call.1}
  #allocation0 [shape = 'u32[]', space=smem, size = 0x4, offset = 0x4, fixed_abs, tag = 'smem constant byte address 0x4 - core index']
  #allocation1 [shape = 'u32[72,128]{1,0:T(1,128)}', space=vmem, size = 0x9000, scoped, tag = 'internal scratch']
  %s0 = inlined_call_operand.hbm [shape: f32[8,128], index: 0, kind: input, shape index: {}]
  %s1 = inlined_call_operand.hbm [shape: f32[16,128], index: 1, kind: output, shape index: {}]
  %s2 = sld [smem:[#allocation0]]
  $region41: #{tpu_custom_call.1} parent=0
    _
  %s4 = ssub.s32 1, %s2
  %s5 = scalar_select 0, %s4, %s2
  $region1: #{tpu_custom_call.1} parent=0
    #allocation2 [shape = 'u8[4096]{0}', space=vmem, size = 0x1000, scoped, tag = 'input window, operand 0, single buffered']
    #allocation3 [shape = 's32[2]{0}', space=sflag, size = 0x8, scoped, tag = 'scoped memory for tpu_custom_call.1']
    #allocation4 [shape = 's32[2]{0}', space=sflag, size = 0x8, scoped, tag = 'scoped memory for tpu_custom_call.1']
    #allocation5 [shape = 'u8[8192]{0}', space=vmem, size = 0x2000, scoped, tag = 'output window, operand 0']
    %6 = vsyncpa [#allocation3], 0
    %7 = vsyncpa [#allocation4], 0
    %s8 = scalar_lea.sflag [#allocation4], 1
    %9 = vsyncpa %s8, 0
    loop: start=0, step=1, limit=4
    $region2: #{tpu_custom_call.1} parent=1 // loop_pre_header
      _
    $region3: #{tpu_custom_call.1} parent=1 // loop_header
      %s11 = sphi 0, %s15
      %p12 = scmp.ge.s32.totalorder %s11, 4
      %s19 = sphi 0, %s19
      %s21 = sphi 0, %s19
      %s22 = sphi 0, %s21
      %s36 = sphi 0, %s22
      %s42 = sphi 0, %s44
      %s45 = sphi 0, %s42
      %s46 = sphi 0, %s45
      %s62 = sphi 0, %s46
    $region4: #{tpu_custom_call.1} parent=1 // loop_header_branch
      %14 = sbr.rel (%p12) target = $region8
    $region5: #{tpu_custom_call.1} parent=1 // loop_body
      %s16 = ssub.s32 %s11, 1
      %s17 = ssub.s32 %s11, 2
      %s18 = sadd.s32 %s11, 1
      %s20 = sadd.s32 %s19, 1
      %p23 = scmp.eq.s32.totalorder %s11, 1
      %p24 = scmp.ne.s32.totalorder %s19, %s21
      %p25 = scmp.eq.s32.totalorder %s11, 0
      %p26 = por %p24, %p25
      %p27 = scmp.ne.s32.totalorder %s19, %s21
      %p28 = scmp.eq.s32.totalorder %s16, 1
      %p29 = por %p27, %p28
      %p30 = scmp.ne.s32.totalorder %s21, %s22
      %p31 = scmp.eq.s32.totalorder %s16, 0
      %p32 = por %p30, %p31
      %p33 = scmp.ne.s32.totalorder %s21, %s22
      %p34 = scmp.eq.s32.totalorder %s17, 1
      %p35 = por %p33, %p34
      %p37 = scmp.ne.s32.totalorder %s22, %s36
      %p38 = scmp.eq.s32.totalorder %s17, 0
      %p39 = por %p37, %p38
      %s40 = ssub.s32 %s11, %s18
      %p41 = scmp.eq.s32.totalorder %s40, 0
      %s43 = sadd.s32 %s42, 1
      %s44 = scalar_select %p41, %s42, %s43
      %p47 = pneg %p41
      %p48 = scmp.eq.s32.totalorder %s11, 1
      %p49 = por %p47, %p48
      %p50 = scmp.ne.s32.totalorder %s42, %s45
      %p51 = scmp.eq.s32.totalorder %s11, 0
      %p52 = por %p50, %p51
      %p53 = scmp.ne.s32.totalorder %s42, %s45
      %p54 = scmp.eq.s32.totalorder %s16, 1
      %p55 = por %p53, %p54
      %p56 = scmp.ne.s32.totalorder %s45, %s46
      %p57 = scmp.eq.s32.totalorder %s16, 0
      %p58 = por %p56, %p57
      %p59 = scmp.ne.s32.totalorder %s45, %s46
      %p60 = scmp.eq.s32.totalorder %s17, 1
      %p61 = por %p59, %p60
      %p63 = scmp.ne.s32.totalorder %s46, %s62
      %p64 = scmp.eq.s32.totalorder %s17, 0
      %p65 = por %p63, %p64
      %p66 = scmp.le.s32.totalorder 1, %s11
      %p67 = scmp.lt.s32.totalorder %s11, 3
      %p68 = pnand %p66, %p67
      %p69 = pneg %p68
      // Predicated region
      $region9: #{tpu_custom_call.1} parent=5 // pred_check
        _
      $region10: #{tpu_custom_call.1} parent=5 // pred_check_branch
        %71 = sbr.rel (%p68) target = $region12
      $region11: #{tpu_custom_call.1} parent=5 // pred_region
        %s72 = ssub.s32 %s11, 1
        // Predicated region
        $region13: #{tpu_custom_call.1} parent=11 // pred_check
          %p73 = pneg %p32
        $region14: #{tpu_custom_call.1} parent=11 // pred_check_branch
          %75 = sbr.rel (%p73) target = $region16
        $region15: #{tpu_custom_call.1} parent=11 // pred_region
          %77 = vsyncadd [#allocation3], 0
          %s79 = sshll.u32 %s0, 4
          %s80 = int_to_ptr.hbm [resolvable:$true] %s79
          %s81 = sshll.u32 [#allocation2], 4
          %s82 = int_to_ptr.vmem [resolvable:$true] %s81
          %84 = dma.hbm_to_vmem [thread:$0]  %s80, 128, %s82, [#allocation3]
        $region16: #{tpu_custom_call.1} parent=11 // pred_fallthru
          _
      $region12: #{tpu_custom_call.1} parent=5 // pred_fallthru
        _
      %p85 = scmp.lt.s32.totalorder %s11, 2
      // Predicated region
      $region17: #{tpu_custom_call.1} parent=5 // pred_check
        %p86 = pneg %p85
      $region18: #{tpu_custom_call.1} parent=5 // pred_check_branch
        %88 = sbr.rel (%p86) target = $region20
      $region19: #{tpu_custom_call.1} parent=5 // pred_region
        _
      $region20: #{tpu_custom_call.1} parent=5 // pred_fallthru
        _
      %p89 = scmp.le.s32.totalorder 1, %s11
      %p90 = scmp.lt.s32.totalorder %s11, 3
      %p91 = pnand %p89, %p90
      %p92 = pneg %p91
      // Predicated region
      $region21: #{tpu_custom_call.1} parent=5 // pred_check
        _
      $region22: #{tpu_custom_call.1} parent=5 // pred_check_branch
        %94 = sbr.rel (%p91) target = $region24
      $region23: #{tpu_custom_call.1} parent=5 // pred_region
        %s95 = ssub.s32 %s11, 1
        // Predicated region
        $region25: #{tpu_custom_call.1} parent=23 // pred_check
          %p96 = pneg %p32
        $region26: #{tpu_custom_call.1} parent=23 // pred_check_branch
          %98 = sbr.rel (%p96) target = $region28
        $region27: #{tpu_custom_call.1} parent=23 // pred_region
          %100 = dma.done [#allocation3], 128
        $region28: #{tpu_custom_call.1} parent=23 // pred_fallthru
          _
        %p101 = pneg %p32
        %p102 = pneg %p29
        %p103 = pneg %p58
        %p104 = pneg %p55
        %s105 = sand.u32 %s45, 1
        %s106 = scalar_lea.sflag [#allocation4], %s105
        %s107 = sand.u32 %s45, 1
        %s108 = smul.addr %s107, 8
        %s109 = scalar_lea.vmem [#allocation5], %s108
        %v110 = vld [vmem:[#allocation2] sm:$0xff]
        %v111 = vadd.f32 %v110, 1.0
        %112 = vst [vmem:[%s109] sm:$0xff] %v111
        %s113 = sand.u32 %s45, 1
        %s114 = scalar_lea.sflag [#allocation4], %s113
        %s115 = sand.u32 %s45, 1
        %s116 = smul.addr %s115, 8
        %s117 = scalar_lea.vmem [#allocation5], %s116
        // Predicated region
        $region29: #{tpu_custom_call.1} parent=23 // pred_check
          %p118 = pneg %p55
        $region30: #{tpu_custom_call.1} parent=23 // pred_check_branch
          %120 = sbr.rel (%p118) target = $region32
        $region31: #{tpu_custom_call.1} parent=23 // pred_region
          %122 = vsyncadd %s114, 0
          %s123 = smul.addr %s16, 8
          %s124 = scalar_lea.hbm %s1, %s123
          %s126 = sshll.u32 %s117, 4
          %s127 = int_to_ptr.vmem [resolvable:$true] %s126
          %s128 = sshll.u32 %s124, 4
          %s129 = int_to_ptr.hbm [resolvable:$true] %s128
          %131 = dma.vmem_to_hbm [thread:$0]  %s127, 128, %s129, %s114
        $region32: #{tpu_custom_call.1} parent=23 // pred_fallthru
          _
      $region24: #{tpu_custom_call.1} parent=5 // pred_fallthru
        _
      %p132 = scmp.le.s32.totalorder 2, %s11
      // Predicated region
      $region33: #{tpu_custom_call.1} parent=5 // pred_check
        %p133 = pneg %p132
      $region34: #{tpu_custom_call.1} parent=5 // pred_check_branch
        %135 = sbr.rel (%p133) target = $region36
      $region35: #{tpu_custom_call.1} parent=5 // pred_region
        %s136 = ssub.s32 %s11, 2
        // Predicated region
        $region37: #{tpu_custom_call.1} parent=35 // pred_check
          %p137 = pneg %p61
        $region38: #{tpu_custom_call.1} parent=35 // pred_check_branch
          %139 = sbr.rel (%p137) target = $region40
        $region39: #{tpu_custom_call.1} parent=35 // pred_region
          %s140 = sand.u32 %s46, 1
          %s141 = scalar_lea.sflag [#allocation4], %s140
          %s142 = sand.u32 %s46, 1
          %s143 = smul.addr %s142, 8
          %s144 = scalar_lea.vmem [#allocation5], %s143
          %146 = dma.done %s141, 128
        $region40: #{tpu_custom_call.1} parent=35 // pred_fallthru
          _
      $region36: #{tpu_custom_call.1} parent=5 // pred_fallthru
        _
    $region6: #{tpu_custom_call.1} parent=1 // loop_footer
      %s15 = sadd.s32 1, %s11
    $region7: #{tpu_custom_call.1} parent=1 // loop_footer_branch
      %10 = sbr.rel target = $region3
    $region8: #{tpu_custom_call.1} parent=1 // loop_exit
      _
    %147 = vsyncpa [#allocation3], 1
    %s148 = scalar_lea.sflag [#allocation3], 1
    %149 = vsyncpa %s148, 1
    %150 = vsyncpa [#allocation4], 1
    %s151 = scalar_lea.sflag [#allocation4], 1
    %152 = vsyncpa %s151, 1

// kernel: _decoder_forward_impl.1
$region0: #{_decoder_forward_impl.1}
  #allocation0 [shape = 'u32[]', space=smem, size = 0x4, offset = 0x4, fixed_abs, tag = 'smem constant byte address 0x4 - core index']
  #allocation1 [shape = 'u32[72,128]{1,0:T(1,128)}', space=vmem, size = 0x9000, scoped, tag = 'internal scratch']
  %s0 = inlined_call_operand.vmem [shape: bf16[16,128], index: 0, kind: input, shape index: {}]
  %s1 = inlined_call_operand.hbm [shape: bf16[128,128], index: 1, kind: input, shape index: {}]
  %s2 = inlined_call_operand.hbm [shape: bf16[128,128], index: 2, kind: input, shape index: {}]
  %s3 = inlined_call_operand.hbm [shape: bf16[128,128], index: 3, kind: input, shape index: {}]
  %s4 = inlined_call_operand.hbm [shape: bf16[128,128], index: 4, kind: input, shape index: {}]
  %s5 = inlined_call_operand.hbm [shape: bf16[128,128], index: 5, kind: input, shape index: {}]
  %s6 = inlined_call_operand.vmem [shape: f32[8,128], index: 6, kind: input, shape index: {}]
  %s7 = inlined_call_operand.hbm [shape: f32[16,128], index: 7, kind: output, shape index: {}]
  %s8 = sld [smem:[#allocation0]]
  $region58: #{_decoder_forward_impl.1} parent=0
    _
  %s10 = ssub.s32 1, %s8
  %s11 = scalar_select 0, %s10, %s8
  $region1: #{_decoder_forward_impl.1} parent=0
    #allocation2 [shape = 'u8[32768]{0}', space=vmem, size = 0x8000, scoped, tag = 'input window, operand 1, single buffered']
    #allocation3 [shape = 's32[1]{0}', space=sflag, size = 0x4, scoped, tag = 'scoped memory for _decoder_forward_impl.1']
    #allocation4 [shape = 's32[1]{0}', space=sflag, size = 0x4, scoped, tag = 'scoped memory for _decoder_forward_impl.1']
    #allocation5 [shape = 'u8[32768]{0}', space=vmem, size = 0x8000, scoped, tag = 'input window, operand 2, single buffered']
    #allocation6 [shape = 's32[1]{0}', space=sflag, size = 0x4, scoped, tag = 'scoped memory for _decoder_forward_impl.1']
    #allocation7 [shape = 'u8[32768]{0}', space=vmem, size = 0x8000, scoped, tag = 'input window, operand 3, single buffered']
    #allocation8 [shape = 'u8[32768]{0}', space=vmem, size = 0x8000, scoped, tag = 'input window, operand 4, single buffered']
    #allocation9 [shape = 's32[1]{0}', space=sflag, size = 0x4, scoped, tag = 'scoped memory for _decoder_forward_impl.1']
    #allocation10 [shape = 'u8[32768]{0}', space=vmem, size = 0x8000, scoped, tag = 'input window, operand 5, single buffered']
    #allocation11 [shape = 'u8[8192]{0}', space=vmem, size = 0x2000, scoped, tag = 'output window, operand 0, single buffered']
    %12 = vsyncpa [#allocation3], 0
    %13 = vsyncpa [#allocation6], 0
    %14 = vsyncpa [#allocation9], 0
    %15 = vsyncpa [#allocation4], 0
    // Predicated region
    $region2: #{_decoder_forward_impl.1} parent=1 // pred_check
      _
    $region3: #{_decoder_forward_impl.1} parent=1 // pred_check_branch
      %17 = sbr.rel (0) target = $region5
    $region4: #{_decoder_forward_impl.1} parent=1 // pred_region
      _
    $region5: #{_decoder_forward_impl.1} parent=1 // pred_fallthru
      _
    // Predicated region
    $region6: #{_decoder_forward_impl.1} parent=1 // pred_check
      _
    $region7: #{_decoder_forward_impl.1} parent=1 // pred_check_branch
      %19 = sbr.rel (0) target = $region9
    $region8: #{_decoder_forward_impl.1} parent=1 // pred_region
      %21 = vsyncadd [#allocation3], 0
      %s22 = sshll.u32 %s1, 4
      %s23 = int_to_ptr.hbm [resolvable:$true] %s22
      %s24 = sshll.u32 [#allocation2], 4
      %s25 = int_to_ptr.vmem [resolvable:$true] %s24
      %30 = dma.hbm_to_vmem [thread:$0]  %s23, 1024, %s25, [#allocation3], 64, 64, 4
    $region9: #{_decoder_forward_impl.1} parent=1 // pred_fallthru
      _
    // Predicated region
    $region10: #{_decoder_forward_impl.1} parent=1 // pred_check
      _
    $region11: #{_decoder_forward_impl.1} parent=1 // pred_check_branch
      %32 = sbr.rel (0) target = $region13
    $region12: #{_decoder_forward_impl.1} parent=1 // pred_region
      %34 = vsyncadd [#allocation6], 0
      %s35 = sshll.u32 %s2, 4
      %s36 = int_to_ptr.hbm [resolvable:$true] %s35
      %s37 = sshll.u32 [#allocation5], 4
      %s38 = int_to_ptr.vmem [resolvable:$true] %s37
      %43 = dma.hbm_to_vmem [thread:$0]  %s36, 1024, %s38, [#allocation6], 64, 64, 4
    $region13: #{_decoder_forward_impl.1} parent=1 // pred_fallthru
      _
    // Predicated region
    $region14: #{_decoder_forward_impl.1} parent=1 // pred_check
      _
    $region15: #{_decoder_forward_impl.1} parent=1 // pred_check_branch
      %45 = sbr.rel (0) target = $region17
    $region16: #{_decoder_forward_impl.1} parent=1 // pred_region
      %47 = vsyncadd [#allocation6], 0
      %s48 = sshll.u32 %s3, 4
      %s49 = int_to_ptr.hbm [resolvable:$true] %s48
      %s50 = sshll.u32 [#allocation7], 4
      %s51 = int_to_ptr.vmem [resolvable:$true] %s50
      %56 = dma.hbm_to_vmem [thread:$0]  %s49, 1024, %s51, [#allocation6], 64, 64, 4
    $region17: #{_decoder_forward_impl.1} parent=1 // pred_fallthru
      _
    // Predicated region
    $region18: #{_decoder_forward_impl.1} parent=1 // pred_check
      _
    $region19: #{_decoder_forward_impl.1} parent=1 // pred_check_branch
      %58 = sbr.rel (0) target = $region21
    $region20: #{_decoder_forward_impl.1} parent=1 // pred_region
      %60 = vsyncadd [#allocation9], 0
      %s61 = sshll.u32 %s4, 4
      %s62 = int_to_ptr.hbm [resolvable:$true] %s61
      %s63 = sshll.u32 [#allocation8], 4
      %s64 = int_to_ptr.vmem [resolvable:$true] %s63
      %69 = dma.hbm_to_vmem [thread:$0]  %s62, 1024, %s64, [#allocation9], 64, 64, 4
    $region21: #{_decoder_forward_impl.1} parent=1 // pred_fallthru
      _
    // Predicated region
    $region22: #{_decoder_forward_impl.1} parent=1 // pred_check
      _
    $region23: #{_decoder_forward_impl.1} parent=1 // pred_check_branch
      %71 = sbr.rel (0) target = $region25
    $region24: #{_decoder_forward_impl.1} parent=1 // pred_region
      %73 = vsyncadd [#allocation9], 0
      %s74 = sshll.u32 %s5, 4
      %s75 = int_to_ptr.hbm [resolvable:$true] %s74
      %s76 = sshll.u32 [#allocation10], 4
      %s77 = int_to_ptr.vmem [resolvable:$true] %s76
      %82 = dma.hbm_to_vmem [thread:$0]  %s75, 1024, %s77, [#allocation9], 64, 64, 4
    $region25: #{_decoder_forward_impl.1} parent=1 // pred_fallthru
      _
    // Predicated region
    $region26: #{_decoder_forward_impl.1} parent=1 // pred_check
      _
    $region27: #{_decoder_forward_impl.1} parent=1 // pred_check_branch
      %84 = sbr.rel (0) target = $region29
    $region28: #{_decoder_forward_impl.1} parent=1 // pred_region
      _
    $region29: #{_decoder_forward_impl.1} parent=1 // pred_fallthru
      _
    // Predicated region
    $region30: #{_decoder_forward_impl.1} parent=1 // pred_check
      _
    $region31: #{_decoder_forward_impl.1} parent=1 // pred_check_branch
      %86 = sbr.rel (0) target = $region33
    $region32: #{_decoder_forward_impl.1} parent=1 // pred_region
      %88 = dma.done [#allocation3], 1024
    $region33: #{_decoder_forward_impl.1} parent=1 // pred_fallthru
      _
    // Predicated region
    $region34: #{_decoder_forward_impl.1} parent=1 // pred_check
      _
    $region35: #{_decoder_forward_impl.1} parent=1 // pred_check_branch
      %90 = sbr.rel (0) target = $region37
    $region36: #{_decoder_forward_impl.1} parent=1 // pred_region
      %92 = dma.done [#allocation6], 1024
    $region37: #{_decoder_forward_impl.1} parent=1 // pred_fallthru
      _
    // Predicated region
    $region38: #{_decoder_forward_impl.1} parent=1 // pred_check
      _
    $region39: #{_decoder_forward_impl.1} parent=1 // pred_check_branch
      %94 = sbr.rel (0) target = $region41
    $region40: #{_decoder_forward_impl.1} parent=1 // pred_region
      %96 = dma.done [#allocation6], 1024
    $region41: #{_decoder_forward_impl.1} parent=1 // pred_fallthru
      _
    // Predicated region
    $region42: #{_decoder_forward_impl.1} parent=1 // pred_check
      _
    $region43: #{_decoder_forward_impl.1} parent=1 // pred_check_branch
      %98 = sbr.rel (0) target = $region45
    $region44: #{_decoder_forward_impl.1} parent=1 // pred_region
      %100 = dma.done [#allocation9], 1024
    $region45: #{_decoder_forward_impl.1} parent=1 // pred_fallthru
      _
    // Predicated region
    $region46: #{_decoder_forward_impl.1} parent=1 // pred_check
      _
    $region47: #{_decoder_forward_impl.1} parent=1 // pred_check_branch
      %102 = sbr.rel (0) target = $region49
    $region48: #{_decoder_forward_impl.1} parent=1 // pred_region
      %104 = dma.done [#allocation9], 1024
    $region49: #{_decoder_forward_impl.1} parent=1 // pred_fallthru
      _
    %v105 = vld [vmem:[%s6] sm:$0xff]
    %v106 = vld [vmem:[%s0] sm:$0xf]
    %v107 = vld [vmem:[%s0 + $0x4] sm:$0xf]
    %v108 = vld [vmem:[#allocation2] sm:$0xf]
    %v109 = vld [vmem:[#allocation2 + $0x4] sm:$0xf]
    %v110 = vld [vmem:[#allocation2 + $0x8] sm:$0xf]
    %v111 = vld [vmem:[#allocation2 + $0xc] sm:$0xf]
    %v112 = vld [vmem:[#allocation2 + $0x10] sm:$0xf]
    %v113 = vld [vmem:[#allocation2 + $0x14] sm:$0xf]
    %v114 = vld [vmem:[#allocation2 + $0x18] sm:$0xf]
    %v115 = vld [vmem:[#allocation2 + $0x1c] sm:$0xf]
    %v116 = vld [vmem:[#allocation2 + $0x20] sm:$0xf]
    %v117 = vld [vmem:[#allocation2 + $0x24] sm:$0xf]
    %v118 = vld [vmem:[#allocation2 + $0x28] sm:$0xf]
    %v119 = vld [vmem:[#allocation2 + $0x2c] sm:$0xf]
    %v120 = vld [vmem:[#allocation2 + $0x30] sm:$0xf]
    %v121 = vld [vmem:[#allocation2 + $0x34] sm:$0xf]
    %v122 = vld [vmem:[#allocation2 + $0x38] sm:$0xf]
    %v123 = vld [vmem:[#allocation2 + $0x3c] sm:$0xf]
    %v124 = vperm.slane %v105, 0
    %v127 = vunpack.c.l.b16 %v106
    %v128 = vunpack.c.l.b16 %v107
    %v129 = vpack.c.b16 %v128, %v127
    %v147 = vunpack.c.l.b16 %v108
    %v148 = vunpack.c.l.b16 %v109
    %v149 = vunpack.c.l.b16 %v110
    %v150 = vunpack.c.l.b16 %v111
    %v151 = vunpack.c.l.b16 %v112
    %v152 = vunpack.c.l.b16 %v113
    %v153 = vunpack.c.l.b16 %v114
    %v154 = vunpack.c.l.b16 %v115
    %v155 = vunpack.c.l.b16 %v116
    %v156 = vunpack.c.l.b16 %v117
    %v157 = vunpack.c.l.b16 %v118
    %v158 = vunpack.c.l.b16 %v119
    %v159 = vunpack.c.l.b16 %v120
    %v160 = vunpack.c.l.b16 %v121
    %v161 = vunpack.c.l.b16 %v122
    %v162 = vunpack.c.l.b16 %v123
    %v163 = vpack.c.b16 %v148, %v147
    %v164 = vpack.c.b16 %v150, %v149
    %v165 = vpack.c.b16 %v152, %v151
    %v166 = vpack.c.b16 %v154, %v153
    %v167 = vpack.c.b16 %v156, %v155
    %v168 = vpack.c.b16 %v158, %v157
    %v169 = vpack.c.b16 %v160, %v159
    %v170 = vpack.c.b16 %v162, %v161
    %179 = vmatpush.bf16.msra.mxu0 %v170
    %180 = vmatpush.bf16.msra.mxu0 %v169
    %181 = vmatpush.bf16.msra.mxu0 %v168
    %182 = vmatpush.bf16.msra.mxu0 %v167
    %183 = vmatpush.bf16.msra.mxu0 %v166
    %184 = vmatpush.bf16.msra.mxu0 %v165
    %185 = vmatpush.bf16.msra.mxu0 %v164
    %186 = vmatpush.bf16.msra.mxu0 %v163
    %187 = vmatmul.bf16.gmra.mxu0 %v129
    %v188 = vpop.f32.mrf.mxu0
    %v189 = vadd.f32 %v124, %v188
    %v190 = vpop.f32.mrf.mxu0
    %v191 = vadd.f32 %v124, %v190
    %192 = vdwg.mxu0
    %vm193 = vcmp.gt.f32.partialorder %v189, 0.0
    %vm194 = vcmp.gt.f32.partialorder %v191, 0.0
    %v195 = vmul.f32 %v189, 0.2
    %v196 = vmul.f32 %v191, 0.2
    %v197 = vsel %vm193, %v189, %v195
    %v198 = vsel %vm194, %v191, %v196
    %v199 = vpack.c.bf16 %v198, %v197
    %v200 = vld [vmem:[#allocation5] sm:$0xf]
    %v201 = vld [vmem:[#allocation5 + $0x4] sm:$0xf]
    %v202 = vld [vmem:[#allocation5 + $0x8] sm:$0xf]
    %v203 = vld [vmem:[#allocation5 + $0xc] sm:$0xf]
    %v204 = vld [vmem:[#allocation5 + $0x10] sm:$0xf]
    %v205 = vld [vmem:[#allocation5 + $0x14] sm:$0xf]
    %v206 = vld [vmem:[#allocation5 + $0x18] sm:$0xf]
    %v207 = vld [vmem:[#allocation5 + $0x1c] sm:$0xf]
    %v208 = vld [vmem:[#allocation5 + $0x20] sm:$0xf]
    %v209 = vld [vmem:[#allocation5 + $0x24] sm:$0xf]
    %v210 = vld [vmem:[#allocation5 + $0x28] sm:$0xf]
    %v211 = vld [vmem:[#allocation5 + $0x2c] sm:$0xf]
    %v212 = vld [vmem:[#allocation5 + $0x30] sm:$0xf]
    %v213 = vld [vmem:[#allocation5 + $0x34] sm:$0xf]
    %v214 = vld [vmem:[#allocation5 + $0x38] sm:$0xf]
    %v215 = vld [vmem:[#allocation5 + $0x3c] sm:$0xf]
    %v216 = vperm.slane %v105, 1
    %v233 = vunpack.c.l.b16 %v200
    %v234 = vunpack.c.l.b16 %v201
    %v235 = vunpack.c.l.b16 %v202
    %v236 = vunpack.c.l.b16 %v203
    %v237 = vunpack.c.l.b16 %v204
    %v238 = vunpack.c.l.b16 %v205
    %v239 = vunpack.c.l.b16 %v206
    %v240 = vunpack.c.l.b16 %v207
    %v241 = vunpack.c.l.b16 %v208
    %v242 = vunpack.c.l.b16 %v209
    %v243 = vunpack.c.l.b16 %v210
    %v244 = vunpack.c.l.b16 %v211
    %v245 = vunpack.c.l.b16 %v212
    %v246 = vunpack.c.l.b16 %v213
    %v247 = vunpack.c.l.b16 %v214
    %v248 = vunpack.c.l.b16 %v215
    %v249 = vpack.c.b16 %v234, %v233
    %v250 = vpack.c.b16 %v236, %v235
    %v251 = vpack.c.b16 %v238, %v237
    %v252 = vpack.c.b16 %v240, %v239
    %v253 = vpack.c.b16 %v242, %v241
    %v254 = vpack.c.b16 %v244, %v243
    %v255 = vpack.c.b16 %v246, %v245
    %v256 = vpack.c.b16 %v248, %v247
    %265 = vmatpush.bf16.msra.mxu0 %v256
    %266 = vmatpush.bf16.msra.mxu0 %v255
    %267 = vmatpush.bf16.msra.mxu0 %v254
    %268 = vmatpush.bf16.msra.mxu0 %v253
    %269 = vmatpush.bf16.msra.mxu0 %v252
    %270 = vmatpush.bf16.msra.mxu0 %v251
    %271 = vmatpush.bf16.msra.mxu0 %v250
    %272 = vmatpush.bf16.msra.mxu0 %v249
    %273 = vmatmul.bf16.gmra.mxu0 %v199
    %v274 = vpop.f32.mrf.mxu0
    %v275 = vadd.f32 %v216, %v274
    %v276 = vpop.f32.mrf.mxu0
    %v277 = vadd.f32 %v216, %v276
    %278 = vdwg.mxu0
    %vm279 = vcmp.gt.f32.partialorder %v275, 0.0
    %vm280 = vcmp.gt.f32.partialorder %v277, 0.0
    %v281 = vmul.f32 %v275, 0.2
    %v282 = vmul.f32 %v277, 0.2
    %v283 = vsel %vm279, %v275, %v281
    %v284 = vsel %vm280, %v277, %v282
    %v285 = vpack.c.bf16 %v284, %v283
    %v286 = vld [vmem:[#allocation7] sm:$0xf]
    %v287 = vld [vmem:[#allocation7 + $0x4] sm:$0xf]
    %v288 = vld [vmem:[#allocation7 + $0x8] sm:$0xf]
    %v289 = vld [vmem:[#allocation7 + $0xc] sm:$0xf]
    %v290 = vld [vmem:[#allocation7 + $0x10] sm:$0xf]
    %v291 = vld [vmem:[#allocation7 + $0x14] sm:$0xf]
    %v292 = vld [vmem:[#allocation7 + $0x18] sm:$0xf]
    %v293 = vld [vmem:[#allocation7 + $0x1c] sm:$0xf]
    %v294 = vld [vmem:[#allocation7 + $0x20] sm:$0xf]
    %v295 = vld [vmem:[#allocation7 + $0x24] sm:$0xf]
    %v296 = vld [vmem:[#allocation7 + $0x28] sm:$0xf]
    %v297 = vld [vmem:[#allocation7 + $0x2c] sm:$0xf]
    %v298 = vld [vmem:[#allocation7 + $0x30] sm:$0xf]
    %v299 = vld [vmem:[#allocation7 + $0x34] sm:$0xf]
    %v300 = vld [vmem:[#allocation7 + $0x38] sm:$0xf]
    %v301 = vld [vmem:[#allocation7 + $0x3c] sm:$0xf]
    %v302 = vperm.slane %v105, 2
    %v319 = vunpack.c.l.b16 %v286
    %v320 = vunpack.c.l.b16 %v287
    %v321 = vunpack.c.l.b16 %v288
    %v322 = vunpack.c.l.b16 %v289
    %v323 = vunpack.c.l.b16 %v290
    %v324 = vunpack.c.l.b16 %v291
    %v325 = vunpack.c.l.b16 %v292
    %v326 = vunpack.c.l.b16 %v293
    %v327 = vunpack.c.l.b16 %v294
    %v328 = vunpack.c.l.b16 %v295
    %v329 = vunpack.c.l.b16 %v296
    %v330 = vunpack.c.l.b16 %v297
    %v331 = vunpack.c.l.b16 %v298
    %v332 = vunpack.c.l.b16 %v299
    %v333 = vunpack.c.l.b16 %v300
    %v334 = vunpack.c.l.b16 %v301
    %v335 = vpack.c.b16 %v320, %v319
    %v336 = vpack.c.b16 %v322, %v321
    %v337 = vpack.c.b16 %v324, %v323
    %v338 = vpack.c.b16 %v326, %v325
    %v339 = vpack.c.b16 %v328, %v327
    %v340 = vpack.c.b16 %v330, %v329
    %v341 = vpack.c.b16 %v332, %v331
    %v342 = vpack.c.b16 %v334, %v333
    %351 = vmatpush.bf16.msra.mxu0 %v342
    %352 = vmatpush.bf16.msra.mxu0 %v341
    %353 = vmatpush.bf16.msra.mxu0 %v340
    %354 = vmatpush.bf16.msra.mxu0 %v339
    %355 = vmatpush.bf16.msra.mxu0 %v338
    %356 = vmatpush.bf16.msra.mxu0 %v337
    %357 = vmatpush.bf16.msra.mxu0 %v336
    %358 = vmatpush.bf16.msra.mxu0 %v335
    %359 = vmatmul.bf16.gmra.mxu0 %v285
    %v360 = vpop.f32.mrf.mxu0
    %v361 = vadd.f32 %v302, %v360
    %v362 = vpop.f32.mrf.mxu0
    %v363 = vadd.f32 %v302, %v362
    %364 = vdwg.mxu0
    %vm365 = vcmp.gt.f32.partialorder %v361, 0.0
    %vm366 = vcmp.gt.f32.partialorder %v363, 0.0
    %v367 = vmul.f32 %v361, 0.2
    %v368 = vmul.f32 %v363, 0.2
    %v369 = vsel %vm365, %v361, %v367
    %v370 = vsel %vm366, %v363, %v368
    %v371 = vpack.c.bf16 %v370, %v369
    %v372 = vld [vmem:[#allocation8] sm:$0xf]
    %v373 = vld [vmem:[#allocation8 + $0x4] sm:$0xf]
    %v374 = vld [vmem:[#allocation8 + $0x8] sm:$0xf]
    %v375 = vld [vmem:[#allocation8 + $0xc] sm:$0xf]
    %v376 = vld [vmem:[#allocation8 + $0x10] sm:$0xf]
    %v377 = vld [vmem:[#allocation8 + $0x14] sm:$0xf]
    %v378 = vld [vmem:[#allocation8 + $0x18] sm:$0xf]
    %v379 = vld [vmem:[#allocation8 + $0x1c] sm:$0xf]
    %v380 = vld [vmem:[#allocation8 + $0x20] sm:$0xf]
    %v381 = vld [vmem:[#allocation8 + $0x24] sm:$0xf]
    %v382 = vld [vmem:[#allocation8 + $0x28] sm:$0xf]
    %v383 = vld [vmem:[#allocation8 + $0x2c] sm:$0xf]
    %v384 = vld [vmem:[#allocation8 + $0x30] sm:$0xf]
    %v385 = vld [vmem:[#allocation8 + $0x34] sm:$0xf]
    %v386 = vld [vmem:[#allocation8 + $0x38] sm:$0xf]
    %v387 = vld [vmem:[#allocation8 + $0x3c] sm:$0xf]
    %v388 = vperm.slane %v105, 3
    %v405 = vunpack.c.l.b16 %v372
    %v406 = vunpack.c.l.b16 %v373
    %v407 = vunpack.c.l.b16 %v374
    %v408 = vunpack.c.l.b16 %v375
    %v409 = vunpack.c.l.b16 %v376
    %v410 = vunpack.c.l.b16 %v377
    %v411 = vunpack.c.l.b16 %v378
    %v412 = vunpack.c.l.b16 %v379
    %v413 = vunpack.c.l.b16 %v380
    %v414 = vunpack.c.l.b16 %v381
    %v415 = vunpack.c.l.b16 %v382
    %v416 = vunpack.c.l.b16 %v383
    %v417 = vunpack.c.l.b16 %v384
    %v418 = vunpack.c.l.b16 %v385
    %v419 = vunpack.c.l.b16 %v386
    %v420 = vunpack.c.l.b16 %v387
    %v421 = vpack.c.b16 %v406, %v405
    %v422 = vpack.c.b16 %v408, %v407
    %v423 = vpack.c.b16 %v410, %v409
    %v424 = vpack.c.b16 %v412, %v411
    %v425 = vpack.c.b16 %v414, %v413
    %v426 = vpack.c.b16 %v416, %v415
    %v427 = vpack.c.b16 %v418, %v417
    %v428 = vpack.c.b16 %v420, %v419
    %437 = vmatpush.bf16.msra.mxu0 %v428
    %438 = vmatpush.bf16.msra.mxu0 %v427
    %439 = vmatpush.bf16.msra.mxu0 %v426
    %440 = vmatpush.bf16.msra.mxu0 %v425
    %441 = vmatpush.bf16.msra.mxu0 %v424
    %442 = vmatpush.bf16.msra.mxu0 %v423
    %443 = vmatpush.bf16.msra.mxu0 %v422
    %444 = vmatpush.bf16.msra.mxu0 %v421
    %445 = vmatmul.bf16.gmra.mxu0 %v371
    %v446 = vpop.f32.mrf.mxu0
    %v447 = vadd.f32 %v388, %v446
    %v448 = vpop.f32.mrf.mxu0
    %v449 = vadd.f32 %v388, %v448
    %450 = vdwg.mxu0
    %vm451 = vcmp.gt.f32.partialorder %v447, 0.0
    %vm452 = vcmp.gt.f32.partialorder %v449, 0.0
    %v453 = vmul.f32 %v447, 0.2
    %v454 = vmul.f32 %v449, 0.2
    %v455 = vsel %vm451, %v447, %v453
    %v456 = vsel %vm452, %v449, %v454
    %v457 = vpack.c.bf16 %v456, %v455
    %v458 = vld [vmem:[#allocation10] sm:$0xf]
    %v459 = vld [vmem:[#allocation10 + $0x4] sm:$0xf]
    %v460 = vld [vmem:[#allocation10 + $0x8] sm:$0xf]
    %v461 = vld [vmem:[#allocation10 + $0xc] sm:$0xf]
    %v462 = vld [vmem:[#allocation10 + $0x10] sm:$0xf]
    %v463 = vld [vmem:[#allocation10 + $0x14] sm:$0xf]
    %v464 = vld [vmem:[#allocation10 + $0x18] sm:$0xf]
    %v465 = vld [vmem:[#allocation10 + $0x1c] sm:$0xf]
    %v466 = vld [vmem:[#allocation10 + $0x20] sm:$0xf]
    %v467 = vld [vmem:[#allocation10 + $0x24] sm:$0xf]
    %v468 = vld [vmem:[#allocation10 + $0x28] sm:$0xf]
    %v469 = vld [vmem:[#allocation10 + $0x2c] sm:$0xf]
    %v470 = vld [vmem:[#allocation10 + $0x30] sm:$0xf]
    %v471 = vld [vmem:[#allocation10 + $0x34] sm:$0xf]
    %v472 = vld [vmem:[#allocation10 + $0x38] sm:$0xf]
    %v473 = vld [vmem:[#allocation10 + $0x3c] sm:$0xf]
    %v474 = vperm.slane %v105, 4
    %v491 = vunpack.c.l.b16 %v458
    %v492 = vunpack.c.l.b16 %v459
    %v493 = vunpack.c.l.b16 %v460
    %v494 = vunpack.c.l.b16 %v461
    %v495 = vunpack.c.l.b16 %v462
    %v496 = vunpack.c.l.b16 %v463
    %v497 = vunpack.c.l.b16 %v464
    %v498 = vunpack.c.l.b16 %v465
    %v499 = vunpack.c.l.b16 %v466
    %v500 = vunpack.c.l.b16 %v467
    %v501 = vunpack.c.l.b16 %v468
    %v502 = vunpack.c.l.b16 %v469
    %v503 = vunpack.c.l.b16 %v470
    %v504 = vunpack.c.l.b16 %v471
    %v505 = vunpack.c.l.b16 %v472
    %v506 = vunpack.c.l.b16 %v473
    %v507 = vpack.c.b16 %v492, %v491
    %v508 = vpack.c.b16 %v494, %v493
    %v509 = vpack.c.b16 %v496, %v495
    %v510 = vpack.c.b16 %v498, %v497
    %v511 = vpack.c.b16 %v500, %v499
    %v512 = vpack.c.b16 %v502, %v501
    %v513 = vpack.c.b16 %v504, %v503
    %v514 = vpack.c.b16 %v506, %v505
    %523 = vmatpush.bf16.msra.mxu0 %v514
    %524 = vmatpush.bf16.msra.mxu0 %v513
    %525 = vmatpush.bf16.msra.mxu0 %v512
    %526 = vmatpush.bf16.msra.mxu0 %v511
    %527 = vmatpush.bf16.msra.mxu0 %v510
    %528 = vmatpush.bf16.msra.mxu0 %v509
    %529 = vmatpush.bf16.msra.mxu0 %v508
    %530 = vmatpush.bf16.msra.mxu0 %v507
    %531 = vmatmul.bf16.gmra.mxu0 %v457
    %v532 = vpop.f32.mrf.mxu0
    %v533 = vadd.f32 %v474, %v532
    %v534 = vpop.f32.mrf.mxu0
    %v535 = vadd.f32 %v474, %v534
    %536 = vdwg.mxu0
    %537 = vst [vmem:[#allocation11] sm:$0xff] %v533
    %538 = vst [vmem:[#allocation11 + $0x8] sm:$0xff] %v535
    // Predicated region
    $region50: #{_decoder_forward_impl.1} parent=1 // pred_check
      _
    $region51: #{_decoder_forward_impl.1} parent=1 // pred_check_branch
      %540 = sbr.rel (0) target = $region53
    $region52: #{_decoder_forward_impl.1} parent=1 // pred_region
      %542 = vsyncadd [#allocation4], 0
      %s543 = sshll.u32 [#allocation11], 4
      %s544 = int_to_ptr.vmem [resolvable:$true] %s543
      %s545 = sshll.u32 %s7, 4
      %s546 = int_to_ptr.hbm [resolvable:$true] %s545
      %551 = dma.vmem_to_hbm [thread:$0]  %s544, 256, %s546, [#allocation4], 128, 128, 8
    $region53: #{_decoder_forward_impl.1} parent=1 // pred_fallthru
      _
    // Predicated region
    $region54: #{_decoder_forward_impl.1} parent=1 // pred_check
      _
    $region55: #{_decoder_forward_impl.1} parent=1 // pred_check_branch
      %553 = sbr.rel (0) target = $region57
    $region56: #{_decoder_forward_impl.1} parent=1 // pred_region
      %555 = dma.done [#allocation4], 256
    $region57: #{_decoder_forward_impl.1} parent=1 // pred_fallthru
      _
    %556 = vsyncpa [#allocation3], 1
    %557 = vsyncpa [#allocation6], 1
    %558 = vsyncpa [#allocation9], 1
    %559 = vsyncpa [#allocation4], 1

</llo_original>
